<compile_context>
chip_gen: v6e
topology: v6e:2x2x1
jax: 0.10.0
libtpu: 0.0.40
codegen_flags: <defaults>
</compile_context>

<pallas_src>
import functools
import math

import numpy as np
import jax
import jax.numpy as jnp
from jax.experimental import pallas as pl
from jax.experimental.pallas import tpu as pltpu


# ---------------------------------------------------------------------------
# Fused Pallas kernel (one grid step = imgs_per_step whole images)
# ---------------------------------------------------------------------------
def _linear_block_kernel(*refs, K, W, stride):
    if stride > 1:
        (x_ref, w1_ref, b1_ref, w2_ref, b2_ref, w3_ref, b3_ref,
         mask_ref, sel_ref, o_ref) = refs
    else:
        (x_ref, w1_ref, b1_ref, w2_ref, b2_ref, w3_ref, b3_ref,
         mask_ref, o_ref) = refs
        sel_ref = None

    M = x_ref.shape[1]                      # imgs_per_step * H * W (lane dim)
    p = K // 2                              # padding = int(K/2), odd K only

    # ---- 1x1 conv (MXU, bf16 x bf16 -> f32) + folded BN1 + relu6 -----------
    h1 = jnp.dot(w1_ref[...], x_ref[...], preferred_element_type=jnp.float32)
    h1 = jnp.clip(h1 + b1_ref[...], 0.0, 6.0)           # (Chid, M) f32

    # ---- depthwise KxK, stride-1 "same": lane rolls (XLU) + hoisted masks ---
    # lane m = img*H*W + i*W + j ; tap (kh,kw) reads lane m + (kh-p)*W + (kw-p)
    # Image-boundary / tile-wrap invalidity is handled by precomputed masks.
    w2 = w2_ref[...]                                     # (Chid, K*K) f32
    acc0 = None
    acc1 = None
    for kh in range(K):
        for kw in range(K):
            dh, dw = kh - p, kw - p
            off = dh * W + dw
            kk = kh * K + kw
            # shifted[m] = h1[(m + off) % M]; wrapped lanes are masked off.
            tap = h1 if off == 0 else pltpu.roll(h1, shift=(-off) % M, axis=1)
            if not (dh == 0 and dw == 0):
                tap = tap * mask_ref[kk:kk + 1, :]       # (1, M) f32 mask
            contrib = tap * w2[:, kk:kk + 1]             # per-channel weight
            if kk % 2 == 0:
                acc0 = contrib if acc0 is None else acc0 + contrib
            else:
                acc1 = contrib if acc1 is None else acc1 + contrib
    acc = acc0 if acc1 is None else acc0 + acc1
    h2 = jnp.clip(acc + b2_ref[...], 0.0, 6.0)           # (Chid, M) f32

    # ---- stride: bf16 one-hot block-diag selection while still in VMEM -----
    # (exact: one-hot selection of bf16 values with f32 accumulation, and h2
    #  is cast to bf16 for pw3 right after anyway)
    if sel_ref is not None:
        h2 = jnp.dot(h2.astype(jnp.bfloat16), sel_ref[...],
                     preferred_element_type=jnp.float32)

    # ---- 1x1 conv (MXU) + folded BN3 + relu6 -> lane-dense output ----------
    y = jnp.dot(w3_ref[...], h2.astype(jnp.bfloat16),
                preferred_element_type=jnp.float32)
    o_ref[...] = jnp.clip(y + b3_ref[...], 0.0, 6.0)     # (Cout, tile_Ms) f32


# ---------------------------------------------------------------------------
# Host-side helpers (trace-time constants)
# ---------------------------------------------------------------------------
def _choose_imgs_per_step(N, HW, HoWo):
    """Smallest image count per grid step giving >=512 input lanes, >=128
    output lanes, 128-divisible tiles, and dividing N; else the whole batch."""
    target = max(-(-512 // HW), -(-128 // HoWo), 1)
    for ips in range(min(target, N), N + 1):
        if N % ips == 0 and (ips * HW) % 128 == 0 and (ips * HoWo) % 128 == 0:
            return ips
    return N


def _boundary_masks(K, H, W, imgs_per_step):
    """(K*K, imgs_per_step*H*W) f32 validity masks for each depthwise tap."""
    p = K // 2
    i = np.arange(H)[:, None]
    j = np.arange(W)[None, :]
    masks = np.ones((K * K, H, W), np.float32)
    for kh in range(K):
        for kw in range(K):
            dh, dw = kh - p, kw - p
            m = np.ones((H, W), np.float32)
            if dh < 0:
                m = m * (i >= -dh)
            if dh > 0:
                m = m * (i < H - dh)
            if dw < 0:
                m = m * (j >= -dw)
            if dw > 0:
                m = m * (j < W - dw)
            masks[kh * K + kw] = m
    masks = np.tile(masks.reshape(K * K, 1, H * W), (1, imgs_per_step, 1))
    return jnp.asarray(masks.reshape(K * K, imgs_per_step * H * W))


def _selection_matrix(H, W, Ho, Wo, stride, imgs_per_step):
    """Block-diagonal bf16 one-hot (ips*H*W, ips*Ho*Wo) picking strided pixels."""
    HW, HoWo = H * W, Ho * Wo
    S = np.zeros((imgs_per_step * HW, imgs_per_step * HoWo), np.float32)
    for im in range(imgs_per_step):
        for io in range(Ho):
            for jo in range(Wo):
                S[im * HW + io * stride * W + jo * stride,
                  im * HoWo + io * Wo + jo] = 1.0
    return jnp.asarray(S, dtype=jnp.bfloat16)


# ---------------------------------------------------------------------------
# Kernel-native (C, N*H*W) entry point — chain blocks through this to avoid
# per-block layout transposes.
# ---------------------------------------------------------------------------
@functools.partial(jax.jit,
                   static_argnames=("N", "H", "W", "kernel_size", "stride"))
def linear_block_cm(x_cm, params, *, N, H, W, kernel_size=3, stride=1):
    """Fused LinearBlock: (Cin, N*H*W) -> (Cout, N*Ho*Wo), f32."""
    K = kernel_size
    # TODO(synk): padding=int(K/2) only reproduces PyTorch geometry for odd K.
    assert K % 2 == 1, "only odd kernel_size supported"
    Cin = x_cm.shape[0]
    Chid = params['w1'].shape[0]
    Cout = params['w3'].shape[0]
    pd = K // 2
    Ho = (H + 2 * pd - K) // stride + 1
    Wo = (W + 2 * pd - K) // stride + 1
    HW, HoWo = H * W, Ho * Wo
    M, Ms = N * HW, N * HoWo

    ips = _choose_imgs_per_step(N, HW, HoWo)
    tile_M, tile_Ms = ips * HW, ips * HoWo
    grid = (N // ips,)

    # eval-mode BN folded: scale into the conv weights, bias kept separate
    w1f = (params['w1'] * params['s1'][:, None]).astype(jnp.bfloat16)  # (Chid,Cin)
    w2f = (params['w2'] * params['s2'][:, None]).astype(jnp.float32)   # (Chid,K*K)
    w3f = (params['w3'] * params['s3'][:, None]).astype(jnp.bfloat16)  # (Cout,Chid)
    b1 = params['b1'].reshape(Chid, 1).astype(jnp.float32)
    b2 = params['b2'].reshape(Chid, 1).astype(jnp.float32)
    b3 = params['b3'].reshape(Cout, 1).astype(jnp.float32)

    masks = _boundary_masks(K, H, W, ips)                # (K*K, tile_M) f32

    const = lambda b: (0, 0)
    args = [x_cm.astype(jnp.bfloat16), w1f, b1, w2f, b2, w3f, b3, masks]
    in_specs = [
        pl.BlockSpec((Cin, tile_M), lambda b: (0, b)),   # activations: per-step
        pl.BlockSpec(w1f.shape, const),                  # weights: VMEM-resident
        pl.BlockSpec(b1.shape, const),
        pl.BlockSpec(w2f.shape, const),
        pl.BlockSpec(b2.shape, const),
        pl.BlockSpec(w3f.shape, const),
        pl.BlockSpec(b3.shape, const),
        pl.BlockSpec(masks.shape, const),
    ]
    if stride > 1:
        sel = _selection_matrix(H, W, Ho, Wo, stride, ips)
        args.append(sel)
        in_specs.append(pl.BlockSpec(sel.shape, const))

    kernel = functools.partial(_linear_block_kernel, K=K, W=W, stride=stride)
    out = pl.pallas_call(
        kernel,
        out_shape=jax.ShapeDtypeStruct((Cout, Ms), jnp.float32),
        grid=grid,
        in_specs=in_specs,
        out_specs=pl.BlockSpec((Cout, tile_Ms), lambda b: (0, b)),
        compiler_params=pltpu.CompilerParams(
            dimension_semantics=("parallel",),
            vmem_limit_bytes=32 * 1024 * 1024),
    )(*args)
    return out


# ---------------------------------------------------------------------------
# NCHW convenience wrapper (transposes once; chain via linear_block_cm to skip)
# ---------------------------------------------------------------------------
@functools.partial(jax.jit, static_argnames=("kernel_size", "stride"))
def linear_block(x_nchw, params, *, kernel_size=3, stride=1):
    """Fused LinearBlock: (N, Cin, H, W) f32 -> (N, Cout, Ho, Wo) f32."""
    K = kernel_size
    N, Cin, H, W = x_nchw.shape
    Cout = params['w3'].shape[0]
    pd = K // 2
    Ho = (H + 2 * pd - K) // stride + 1
    Wo = (W + 2 * pd - K) // stride + 1

    x_cm = jnp.transpose(x_nchw, (1, 0, 2, 3)).reshape(Cin, N * H * W)
    out = linear_block_cm(x_cm, params, N=N, H=H, W=W,
                          kernel_size=K, stride=stride)
    return jnp.transpose(out.reshape(Cout, N, Ho, Wo), (1, 0, 2, 3))


# ---------------------------------------------------------------------------
# Pure-JAX reference (same bf16 casts on matmul operands as the kernel)
# ---------------------------------------------------------------------------
def linear_block_ref(x_nchw, params, *, kernel_size=3, stride=1):
    K = kernel_size
    N, Cin, H, W = x_nchw.shape
    Chid = params['w1'].shape[0]
    pd = K // 2
    Ho = (H + 2 * pd - K) // stride + 1
    Wo = (W + 2 * pd - K) // stride + 1

    w1f = (params['w1'] * params['s1'][:, None]).astype(jnp.bfloat16)
    h1 = jnp.einsum('oi,nihw->nohw', w1f, x_nchw.astype(jnp.bfloat16),
                    preferred_element_type=jnp.float32)
    h1 = jnp.clip(h1 + params['b1'][None, :, None, None], 0.0, 6.0)

    w2f = (params['w2'] * params['s2'][:, None]).astype(jnp.float32)
    h1p = jnp.pad(h1, ((0, 0), (0, 0), (pd, pd), (pd, pd)))
    acc = jnp.zeros((N, Chid, Ho, Wo), jnp.float32)
    for kh in range(K):
        for kw in range(K):
            tap = h1p[:, :,
                      kh:kh + (Ho - 1) * stride + 1:stride,
                      kw:kw + (Wo - 1) * stride + 1:stride]
            acc = acc + tap * w2f[:, kh * K + kw][None, :, None, None]
    h2 = jnp.clip(acc + params['b2'][None, :, None, None], 0.0, 6.0)

    w3f = (params['w3'] * params['s3'][:, None]).astype(jnp.bfloat16)
    y = jnp.einsum('oc,nchw->nohw', w3f, h2.astype(jnp.bfloat16),
                   preferred_element_type=jnp.float32)
    return jnp.clip(y + params['b3'][None, :, None, None], 0.0, 6.0)


# ---------------------------------------------------------------------------
# Deterministic parameter initialization (eval-mode BN folded to scale/bias)
# ---------------------------------------------------------------------------
def _bn_fold(key, c):
    k1, k2, k3, k4 = jax.random.split(key, 4)
    gamma = jax.random.uniform(k1, (c,), minval=0.5, maxval=1.5)
    beta = 0.1 * jax.random.normal(k2, (c,))
    mean = 0.1 * jax.random.normal(k3, (c,))
    var = jax.random.uniform(k4, (c,), minval=0.5, maxval=1.5)
    scale = gamma / jnp.sqrt(var + 1e-5)
    bias = beta - mean * scale
    return scale.astype(jnp.float32), bias.astype(jnp.float32)


def init_linear_block_params(key, in_planes, out_planes, kernel_size=3, expansion=4):
    hidden = round(in_planes * expansion)
    ks = iter(jax.random.split(key, 6))
    p = {}
    p['w1'] = (jax.random.normal(next(ks), (hidden, in_planes)) /
               math.sqrt(in_planes)).astype(jnp.float32)
    p['s1'], p['b1'] = _bn_fold(next(ks), hidden)
    p['w2'] = (jax.random.normal(next(ks), (hidden, kernel_size * kernel_size)) /
               float(kernel_size)).astype(jnp.float32)
    p['s2'], p['b2'] = _bn_fold(next(ks), hidden)
    p['w3'] = (jax.random.normal(next(ks), (out_planes, hidden)) /
               math.sqrt(hidden)).astype(jnp.float32)
    p['s3'], p['b3'] = _bn_fold(next(ks), out_planes)
    return p


# ---------------------------------------------------------------------------
# Main
# ---------------------------------------------------------------------------
if __name__ == "__main__":
    key = jax.random.PRNGKey(0)
    kx, kx4, kp1, kp2 = jax.random.split(key, 4)

    N, Cin, H, W = 2, 4, 16, 16
    Cout, K, expansion = 8, 3, 4           # hidden = round(4*4) = 16
    x = jax.random.normal(kx, (N, Cin, H, W), dtype=jnp.float32)
    x4 = jax.random.normal(kx4, (4, Cin, H, W), dtype=jnp.float32)  # multi-step grid

    p1 = init_linear_block_params(kp1, Cin, Cout, kernel_size=K, expansion=expansion)
    p2 = init_linear_block_params(kp2, Cin, Cout, kernel_size=K, expansion=expansion)

    out1 = linear_block(x, p1, kernel_size=K, stride=1)    # stride-1 block
    out2 = linear_block(x, p2, kernel_size=K, stride=2)    # downsampling block
    out3 = linear_block(x4, p1, kernel_size=K, stride=1)   # batch grid of 2 steps
    out1, out2, out3 = jax.block_until_ready((out1, out2, out3))

    assert out1.shape == (N, Cout, 16, 16), out1.shape
    assert out2.shape == (N, Cout, 8, 8), out2.shape
    assert out3.shape == (4, Cout, 16, 16), out3.shape
    assert bool(jnp.all(jnp.isfinite(out1))) and bool(jnp.all(jnp.isfinite(out2)))
    assert bool(jnp.all(jnp.isfinite(out3)))

    ref1 = linear_block_ref(x, p1, kernel_size=K, stride=1)
    ref2 = linear_block_ref(x, p2, kernel_size=K, stride=2)
    ref3 = linear_block_ref(x4, p1, kernel_size=K, stride=1)
    assert bool(jnp.allclose(out1, ref1, atol=1e-2, rtol=1e-2)), \
        float(jnp.max(jnp.abs(out1 - ref1)))
    assert bool(jnp.allclose(out2, ref2, atol=1e-2, rtol=1e-2)), \
        float(jnp.max(jnp.abs(out2 - ref2)))
    assert bool(jnp.allclose(out3, ref3, atol=1e-2, rtol=1e-2)), \
        float(jnp.max(jnp.abs(out3 - ref3)))

    print("KERNEL_OK")
</pallas_src>

<mosaic_0001>
module attributes {stable_mosaic.version = 11 : i64} {
  func.func @_linear_block_kernel(%arg0: i32, %arg1: memref<4x512xbf16, #tpu.memory_space<vmem>>, %arg2: memref<16x4xbf16, #tpu.memory_space<vmem>>, %arg3: memref<16x1xf32, #tpu.memory_space<vmem>>, %arg4: memref<16x9xf32, #tpu.memory_space<vmem>>, %arg5: memref<16x1xf32, #tpu.memory_space<vmem>>, %arg6: memref<8x16xbf16, #tpu.memory_space<vmem>>, %arg7: memref<8x1xf32, #tpu.memory_space<vmem>>, %arg8: memref<9x512xf32, #tpu.memory_space<vmem>>, %arg9: memref<8x512xf32, #tpu.memory_space<vmem>>) attributes {dimension_semantics = [#tpu.dimension_semantics<parallel>], iteration_bounds = array<i64: 1>, scalar_prefetch = 0 : i64, scratch_operands = 0 : i64, tpu.core_type = #tpu.core_type<tc>, window_params = [{transform_indices = @transform_0, window_bounds = array<i64: 4, 512>}, {pipeline_mode = #tpu.pipeline_mode<synchronous>, transform_indices = @transform_1, window_bounds = array<i64: 16, 4>}, {pipeline_mode = #tpu.pipeline_mode<synchronous>, transform_indices = @transform_2, window_bounds = array<i64: 16, 1>}, {pipeline_mode = #tpu.pipeline_mode<synchronous>, transform_indices = @transform_3, window_bounds = array<i64: 16, 9>}, {pipeline_mode = #tpu.pipeline_mode<synchronous>, transform_indices = @transform_4, window_bounds = array<i64: 16, 1>}, {pipeline_mode = #tpu.pipeline_mode<synchronous>, transform_indices = @transform_5, window_bounds = array<i64: 8, 16>}, {pipeline_mode = #tpu.pipeline_mode<synchronous>, transform_indices = @transform_6, window_bounds = array<i64: 8, 1>}, {pipeline_mode = #tpu.pipeline_mode<synchronous>, transform_indices = @transform_7, window_bounds = array<i64: 9, 512>}, {transform_indices = @transform_8, window_bounds = array<i64: 8, 512>}]} {
    %c0 = arith.constant 0 : index
    %c0_0 = arith.constant 0 : index
    %0 = vector.load %arg2[%c0, %c0_0] : memref<16x4xbf16, #tpu.memory_space<vmem>>, vector<16x4xbf16>
    %c0_1 = arith.constant 0 : index
    %c0_2 = arith.constant 0 : index
    %1 = vector.load %arg1[%c0_1, %c0_2] : memref<4x512xbf16, #tpu.memory_space<vmem>>, vector<4x512xbf16>
    %cst = arith.constant dense<0.000000e+00> : vector<16x512xf32>
    %2 = tpu.matmul %0, %1, %cst {dimension_numbers = #tpu.dot_dimension_numbers<[1], [0], [0], [1], [0, 0, 1, 1], [], []>} : vector<16x4xbf16>, vector<4x512xbf16>, vector<16x512xf32> -> vector<16x512xf32>
    %c0_3 = arith.constant 0 : index
    %c0_4 = arith.constant 0 : index
    %3 = vector.load %arg3[%c0_3, %c0_4] : memref<16x1xf32, #tpu.memory_space<vmem>>, vector<16x1xf32>
    %4 = vector.broadcast %3 : vector<16x1xf32> to vector<16x512xf32>
    %5 = arith.addf %2, %4 : vector<16x512xf32>
    %cst_5 = arith.constant 0.000000e+00 : f32
    %cst_6 = arith.constant 6.000000e+00 : f32
    %6 = vector.broadcast %cst_5 : f32 to vector<16x512xf32>
    %7 = arith.maximumf %6, %5 : vector<16x512xf32>
    %8 = vector.broadcast %cst_6 : f32 to vector<16x512xf32>
    %9 = arith.minimumf %8, %7 : vector<16x512xf32>
    %c0_7 = arith.constant 0 : index
    %c0_8 = arith.constant 0 : index
    %10 = vector.load %arg4[%c0_7, %c0_8] : memref<16x9xf32, #tpu.memory_space<vmem>>, vector<16x9xf32>
    %c17_i32 = arith.constant 17 : i32
    %11 = tpu.dynamic_rotate %9 by %c17_i32 dim 1 : vector<16x512xf32>, i32 -> vector<16x512xf32>
    %c0_9 = arith.constant 0 : index
    %c0_10 = arith.constant 0 : index
    %12 = vector.load %arg8[%c0_9, %c0_10] : memref<9x512xf32, #tpu.memory_space<vmem>>, vector<1x512xf32>
    %13 = vector.broadcast %12 : vector<1x512xf32> to vector<16x512xf32>
    %14 = arith.mulf %11, %13 : vector<16x512xf32>
    %15 = vector.extract_strided_slice %10 {offsets = [0, 0], sizes = [16, 1], strides = [1, 1]} : vector<16x9xf32> to vector<16x1xf32>
    %16 = vector.broadcast %15 : vector<16x1xf32> to vector<16x512xf32>
    %17 = arith.mulf %14, %16 : vector<16x512xf32>
    %c16_i32 = arith.constant 16 : i32
    %18 = tpu.dynamic_rotate %9 by %c16_i32 dim 1 : vector<16x512xf32>, i32 -> vector<16x512xf32>
    %c1 = arith.constant 1 : index
    %c0_11 = arith.constant 0 : index
    %19 = vector.load %arg8[%c1, %c0_11] : memref<9x512xf32, #tpu.memory_space<vmem>>, vector<1x512xf32>
    %20 = vector.broadcast %19 : vector<1x512xf32> to vector<16x512xf32>
    %21 = arith.mulf %18, %20 : vector<16x512xf32>
    %22 = vector.extract_strided_slice %10 {offsets = [0, 1], sizes = [16, 1], strides = [1, 1]} : vector<16x9xf32> to vector<16x1xf32>
    %23 = vector.broadcast %22 : vector<16x1xf32> to vector<16x512xf32>
    %24 = arith.mulf %21, %23 : vector<16x512xf32>
    %c15_i32 = arith.constant 15 : i32
    %25 = tpu.dynamic_rotate %9 by %c15_i32 dim 1 : vector<16x512xf32>, i32 -> vector<16x512xf32>
    %c2 = arith.constant 2 : index
    %c0_12 = arith.constant 0 : index
    %26 = vector.load %arg8[%c2, %c0_12] : memref<9x512xf32, #tpu.memory_space<vmem>>, vector<1x512xf32>
    %27 = vector.broadcast %26 : vector<1x512xf32> to vector<16x512xf32>
    %28 = arith.mulf %25, %27 : vector<16x512xf32>
    %29 = vector.extract_strided_slice %10 {offsets = [0, 2], sizes = [16, 1], strides = [1, 1]} : vector<16x9xf32> to vector<16x1xf32>
    %30 = vector.broadcast %29 : vector<16x1xf32> to vector<16x512xf32>
    %31 = arith.mulf %28, %30 : vector<16x512xf32>
    %32 = arith.addf %17, %31 : vector<16x512xf32>
    %c1_i32 = arith.constant 1 : i32
    %33 = tpu.dynamic_rotate %9 by %c1_i32 dim 1 : vector<16x512xf32>, i32 -> vector<16x512xf32>
    %c3 = arith.constant 3 : index
    %c0_13 = arith.constant 0 : index
    %34 = vector.load %arg8[%c3, %c0_13] : memref<9x512xf32, #tpu.memory_space<vmem>>, vector<1x512xf32>
    %35 = vector.broadcast %34 : vector<1x512xf32> to vector<16x512xf32>
    %36 = arith.mulf %33, %35 : vector<16x512xf32>
    %37 = vector.extract_strided_slice %10 {offsets = [0, 3], sizes = [16, 1], strides = [1, 1]} : vector<16x9xf32> to vector<16x1xf32>
    %38 = vector.broadcast %37 : vector<16x1xf32> to vector<16x512xf32>
    %39 = arith.mulf %36, %38 : vector<16x512xf32>
    %40 = arith.addf %24, %39 : vector<16x512xf32>
    %41 = vector.extract_strided_slice %10 {offsets = [0, 4], sizes = [16, 1], strides = [1, 1]} : vector<16x9xf32> to vector<16x1xf32>
    %42 = vector.broadcast %41 : vector<16x1xf32> to vector<16x512xf32>
    %43 = arith.mulf %9, %42 : vector<16x512xf32>
    %44 = arith.addf %32, %43 : vector<16x512xf32>
    %c511_i32 = arith.constant 511 : i32
    %45 = tpu.dynamic_rotate %9 by %c511_i32 dim 1 : vector<16x512xf32>, i32 -> vector<16x512xf32>
    %c5 = arith.constant 5 : index
    %c0_14 = arith.constant 0 : index
    %46 = vector.load %arg8[%c5, %c0_14] : memref<9x512xf32, #tpu.memory_space<vmem>>, vector<1x512xf32>
    %47 = vector.broadcast %46 : vector<1x512xf32> to vector<16x512xf32>
    %48 = arith.mulf %45, %47 : vector<16x512xf32>
    %49 = vector.extract_strided_slice %10 {offsets = [0, 5], sizes = [16, 1], strides = [1, 1]} : vector<16x9xf32> to vector<16x1xf32>
    %50 = vector.broadcast %49 : vector<16x1xf32> to vector<16x512xf32>
    %51 = arith.mulf %48, %50 : vector<16x512xf32>
    %52 = arith.addf %40, %51 : vector<16x512xf32>
    %c497_i32 = arith.constant 497 : i32
    %53 = tpu.dynamic_rotate %9 by %c497_i32 dim 1 : vector<16x512xf32>, i32 -> vector<16x512xf32>
    %c6 = arith.constant 6 : index
    %c0_15 = arith.constant 0 : index
    %54 = vector.load %arg8[%c6, %c0_15] : memref<9x512xf32, #tpu.memory_space<vmem>>, vector<1x512xf32>
    %55 = vector.broadcast %54 : vector<1x512xf32> to vector<16x512xf32>
    %56 = arith.mulf %53, %55 : vector<16x512xf32>
    %57 = vector.extract_strided_slice %10 {offsets = [0, 6], sizes = [16, 1], strides = [1, 1]} : vector<16x9xf32> to vector<16x1xf32>
    %58 = vector.broadcast %57 : vector<16x1xf32> to vector<16x512xf32>
    %59 = arith.mulf %56, %58 : vector<16x512xf32>
    %60 = arith.addf %44, %59 : vector<16x512xf32>
    %c496_i32 = arith.constant 496 : i32
    %61 = tpu.dynamic_rotate %9 by %c496_i32 dim 1 : vector<16x512xf32>, i32 -> vector<16x512xf32>
    %c7 = arith.constant 7 : index
    %c0_16 = arith.constant 0 : index
    %62 = vector.load %arg8[%c7, %c0_16] : memref<9x512xf32, #tpu.memory_space<vmem>>, vector<1x512xf32>
    %63 = vector.broadcast %62 : vector<1x512xf32> to vector<16x512xf32>
    %64 = arith.mulf %61, %63 : vector<16x512xf32>
    %65 = vector.extract_strided_slice %10 {offsets = [0, 7], sizes = [16, 1], strides = [1, 1]} : vector<16x9xf32> to vector<16x1xf32>
    %66 = vector.broadcast %65 : vector<16x1xf32> to vector<16x512xf32>
    %67 = arith.mulf %64, %66 : vector<16x512xf32>
    %68 = arith.addf %52, %67 : vector<16x512xf32>
    %c495_i32 = arith.constant 495 : i32
    %69 = tpu.dynamic_rotate %9 by %c495_i32 dim 1 : vector<16x512xf32>, i32 -> vector<16x512xf32>
    %c8 = arith.constant 8 : index
    %c0_17 = arith.constant 0 : index
    %70 = vector.load %arg8[%c8, %c0_17] : memref<9x512xf32, #tpu.memory_space<vmem>>, vector<1x512xf32>
    %71 = vector.broadcast %70 : vector<1x512xf32> to vector<16x512xf32>
    %72 = arith.mulf %69, %71 : vector<16x512xf32>
    %73 = vector.extract_strided_slice %10 {offsets = [0, 8], sizes = [16, 1], strides = [1, 1]} : vector<16x9xf32> to vector<16x1xf32>
    %74 = vector.broadcast %73 : vector<16x1xf32> to vector<16x512xf32>
    %75 = arith.mulf %72, %74 : vector<16x512xf32>
    %76 = arith.addf %60, %75 : vector<16x512xf32>
    %77 = arith.addf %76, %68 : vector<16x512xf32>
    %c0_18 = arith.constant 0 : index
    %c0_19 = arith.constant 0 : index
    %78 = vector.load %arg5[%c0_18, %c0_19] : memref<16x1xf32, #tpu.memory_space<vmem>>, vector<16x1xf32>
    %79 = vector.broadcast %78 : vector<16x1xf32> to vector<16x512xf32>
    %80 = arith.addf %77, %79 : vector<16x512xf32>
    %cst_20 = arith.constant 0.000000e+00 : f32
    %cst_21 = arith.constant 6.000000e+00 : f32
    %81 = vector.broadcast %cst_20 : f32 to vector<16x512xf32>
    %82 = arith.maximumf %81, %80 : vector<16x512xf32>
    %83 = vector.broadcast %cst_21 : f32 to vector<16x512xf32>
    %84 = arith.minimumf %83, %82 : vector<16x512xf32>
    %c0_22 = arith.constant 0 : index
    %c0_23 = arith.constant 0 : index
    %85 = vector.load %arg6[%c0_22, %c0_23] : memref<8x16xbf16, #tpu.memory_space<vmem>>, vector<8x16xbf16>
    %86 = arith.truncf %84 : vector<16x512xf32> to vector<16x512xbf16>
    %cst_24 = arith.constant dense<0.000000e+00> : vector<8x512xf32>
    %87 = tpu.matmul %85, %86, %cst_24 {dimension_numbers = #tpu.dot_dimension_numbers<[1], [0], [0], [1], [0, 0, 1, 1], [], []>} : vector<8x16xbf16>, vector<16x512xbf16>, vector<8x512xf32> -> vector<8x512xf32>
    %c0_25 = arith.constant 0 : index
    %c0_26 = arith.constant 0 : index
    %88 = vector.load %arg7[%c0_25, %c0_26] : memref<8x1xf32, #tpu.memory_space<vmem>>, vector<8x1xf32>
    %89 = vector.broadcast %88 : vector<8x1xf32> to vector<8x512xf32>
    %90 = arith.addf %87, %89 : vector<8x512xf32>
    %cst_27 = arith.constant 0.000000e+00 : f32
    %cst_28 = arith.constant 6.000000e+00 : f32
    %91 = vector.broadcast %cst_27 : f32 to vector<8x512xf32>
    %92 = arith.maximumf %91, %90 : vector<8x512xf32>
    %93 = vector.broadcast %cst_28 : f32 to vector<8x512xf32>
    %94 = arith.minimumf %93, %92 : vector<8x512xf32>
    %c0_29 = arith.constant 0 : index
    %c0_30 = arith.constant 0 : index
    %95 = vector.load %arg9[%c0_29, %c0_30] : memref<8x512xf32, #tpu.memory_space<vmem>>, vector<8x512xf32>
    tpu.vector_store %arg9[%c0_29, %c0_30], %94 {strides = array<i32>} : memref<8x512xf32, #tpu.memory_space<vmem>>, vector<8x512xf32>,
    return
  }
  func.func @transform_0(%arg0: i32) -> (i32, i32) {
    %c0_i32 = arith.constant 0 : i32
    %c0_i32_0 = arith.constant 0 : i32
    return %c0_i32, %arg0 : i32, i32
  }
  func.func @transform_1(%arg0: i32) -> (i32, i32) {
    %c0_i32 = arith.constant 0 : i32
    %c0_i32_0 = arith.constant 0 : i32
    %c0_i32_1 = arith.constant 0 : i32
    return %c0_i32, %c0_i32_0 : i32, i32
  }
  func.func @transform_2(%arg0: i32) -> (i32, i32) {
    %c0_i32 = arith.constant 0 : i32
    %c0_i32_0 = arith.constant 0 : i32
    %c0_i32_1 = arith.constant 0 : i32
    return %c0_i32, %c0_i32_0 : i32, i32
  }
  func.func @transform_3(%arg0: i32) -> (i32, i32) {
    %c0_i32 = arith.constant 0 : i32
    %c0_i32_0 = arith.constant 0 : i32
    %c0_i32_1 = arith.constant 0 : i32
    return %c0_i32, %c0_i32_0 : i32, i32
  }
  func.func @transform_4(%arg0: i32) -> (i32, i32) {
    %c0_i32 = arith.constant 0 : i32
    %c0_i32_0 = arith.constant 0 : i32
    %c0_i32_1 = arith.constant 0 : i32
    return %c0_i32, %c0_i32_0 : i32, i32
  }
  func.func @transform_5(%arg0: i32) -> (i32, i32) {
    %c0_i32 = arith.constant 0 : i32
    %c0_i32_0 = arith.constant 0 : i32
    %c0_i32_1 = arith.constant 0 : i32
    return %c0_i32, %c0_i32_0 : i32, i32
  }
  func.func @transform_6(%arg0: i32) -> (i32, i32) {
    %c0_i32 = arith.constant 0 : i32
    %c0_i32_0 = arith.constant 0 : i32
    %c0_i32_1 = arith.constant 0 : i32
    return %c0_i32, %c0_i32_0 : i32, i32
  }
  func.func @transform_7(%arg0: i32) -> (i32, i32) {
    %c0_i32 = arith.constant 0 : i32
    %c0_i32_0 = arith.constant 0 : i32
    %c0_i32_1 = arith.constant 0 : i32
    return %c0_i32, %c0_i32_0 : i32, i32
  }
  func.func @transform_8(%arg0: i32) -> (i32, i32) {
    %c0_i32 = arith.constant 0 : i32
    %c0_i32_0 = arith.constant 0 : i32
    return %c0_i32, %arg0 : i32, i32
  }
}

</mosaic_0001>

<llo_original>
// kernel: linear_block_cm.1
$region0: #{linear_block_cm.1}
  #allocation0 [shape = 'u32[]', space=smem, size = 0x4, offset = 0x4, fixed_abs, tag = 'smem constant byte address 0x4 - core index']
  #allocation1 [shape = 'u32[144,128]{1,0:T(1,128)}', space=vmem, size = 0x12000, scoped, tag = 'internal scratch']
  %s0 = inlined_call_operand.vmem [shape: bf16[4,512], index: 0, kind: input, shape index: {}]
  %s1 = inlined_call_operand.vmem [shape: bf16[16,4], index: 1, kind: input, shape index: {}]
  %s2 = inlined_call_operand.vmem [shape: f32[16,1], index: 2, kind: input, shape index: {}]
  %s3 = inlined_call_operand.vmem [shape: f32[16,9], index: 3, kind: input, shape index: {}]
  %s4 = inlined_call_operand.vmem [shape: f32[16,1], index: 4, kind: input, shape index: {}]
  %s5 = inlined_call_operand.vmem [shape: bf16[8,16], index: 5, kind: input, shape index: {}]
  %s6 = inlined_call_operand.vmem [shape: f32[8,1], index: 6, kind: input, shape index: {}]
  %s7 = inlined_call_operand.vmem [shape: f32[9,512], index: 7, kind: input, shape index: {}]
  %s8 = inlined_call_operand.hbm [shape: f32[8,512], index: 8, kind: output, shape index: {}]
  %s9 = sld [smem:[#allocation0]]
  $region42: #{linear_block_cm.1} parent=0
    _
  %s11 = ssub.s32 1, %s9
  %s12 = scalar_select 0, %s11, %s9
  $region1: #{linear_block_cm.1} parent=0
    #allocation2 [shape = 'u8[16384]{0}', space=vmem, size = 0x4000, scoped, tag = 'output window, operand 0, single buffered']
    #allocation3 [shape = 's32[1]{0}', space=sflag, size = 0x4, scoped, tag = 'scoped memory for linear_block_cm.1']
    %13 = vsyncpa [#allocation3], 0
    // Predicated region
    $region2: #{linear_block_cm.1} parent=1 // pred_check
      _
    $region3: #{linear_block_cm.1} parent=1 // pred_check_branch
      %15 = sbr.rel (0) target = $region5
    $region4: #{linear_block_cm.1} parent=1 // pred_region
      _
    $region5: #{linear_block_cm.1} parent=1 // pred_fallthru
      _
    // Predicated region
    $region6: #{linear_block_cm.1} parent=1 // pred_check
      _
    $region7: #{linear_block_cm.1} parent=1 // pred_check_branch
      %17 = sbr.rel (0) target = $region9
    $region8: #{linear_block_cm.1} parent=1 // pred_region
      _
    $region9: #{linear_block_cm.1} parent=1 // pred_fallthru
      _
    // Predicated region
    $region10: #{linear_block_cm.1} parent=1 // pred_check
      _
    $region11: #{linear_block_cm.1} parent=1 // pred_check_branch
      %19 = sbr.rel (0) target = $region13
    $region12: #{linear_block_cm.1} parent=1 // pred_region
      _
    $region13: #{linear_block_cm.1} parent=1 // pred_fallthru
      _
    // Predicated region
    $region14: #{linear_block_cm.1} parent=1 // pred_check
      _
    $region15: #{linear_block_cm.1} parent=1 // pred_check_branch
      %21 = sbr.rel (0) target = $region17
    $region16: #{linear_block_cm.1} parent=1 // pred_region
      _
    $region17: #{linear_block_cm.1} parent=1 // pred_fallthru
      _
    // Predicated region
    $region18: #{linear_block_cm.1} parent=1 // pred_check
      _
    $region19: #{linear_block_cm.1} parent=1 // pred_check_branch
      %23 = sbr.rel (0) target = $region21
    $region20: #{linear_block_cm.1} parent=1 // pred_region
      _
    $region21: #{linear_block_cm.1} parent=1 // pred_fallthru
      _
    // Predicated region
    $region22: #{linear_block_cm.1} parent=1 // pred_check
      _
    $region23: #{linear_block_cm.1} parent=1 // pred_check_branch
      %25 = sbr.rel (0) target = $region25
    $region24: #{linear_block_cm.1} parent=1 // pred_region
      _
    $region25: #{linear_block_cm.1} parent=1 // pred_fallthru
      _
    // Predicated region
    $region26: #{linear_block_cm.1} parent=1 // pred_check
      _
    $region27: #{linear_block_cm.1} parent=1 // pred_check_branch
      %27 = sbr.rel (0) target = $region29
    $region28: #{linear_block_cm.1} parent=1 // pred_region
      _
    $region29: #{linear_block_cm.1} parent=1 // pred_fallthru
      _
    // Predicated region
    $region30: #{linear_block_cm.1} parent=1 // pred_check
      _
    $region31: #{linear_block_cm.1} parent=1 // pred_check_branch
      %29 = sbr.rel (0) target = $region33
    $region32: #{linear_block_cm.1} parent=1 // pred_region
      _
    $region33: #{linear_block_cm.1} parent=1 // pred_fallthru
      _
    %v31 = vld [vmem:[%s1] sm:$0xf]
    %v32 = vld [vmem:[%s1 + $0x4] sm:$0xf]
    %v33 = vld [vmem:[%s0] sm:$0xff]
    %v34 = vld [vmem:[%s2] sm:$0xff]
    %v35 = vld [vmem:[%s2 + $0x8] sm:$0xff]
    %37 = vset.pattern.permute.xlu0 0
    %38 = vperm.xlu0 %37, %v34
    %v39 = vpop.permute.xlu0 %38
    %42 = vset.pattern.permute.xlu0 0
    %43 = vperm.xlu0 %42, %v35
    %v44 = vpop.permute.xlu0 %43
    %v48 = vunpack.c.l.b16 %v31
    %v49 = vunpack.c.l.b16 %v32
    %v50 = vpack.c.b16 %v49, %v48
    %v52 = vcombine.high %v33, %v33
    %v54 = vunpack.c.l.s4 1983009808
    %v55 = vunpack.c.0.s8 %v54
    %v56 = vlaneseq
    %v57 = vshrl.u32 %v56, 7
    %v58 = vsub.s32 %v55, %v57
    %v59 = vrot.slane %v33, %v58
    %v61 = vunpack.c.l.s4 1983009808
    %v62 = vunpack.c.0.s8 %v61
    %v63 = vlaneseq
    %v64 = vshrl.u32 %v63, 7
    %v65 = vsub.s32 %v62, %v64
    %v66 = vrot.slane %v52, %v65
    %v67 = vcombine.high %v59, %v59
    %v68 = vcombine.high %v66, %v66
    %vm69 = vcmask 31744
    %v71 = vsel %vm69, %v50, 0
    %vm73 = vcmask 1041408
    %v75 = vsel %vm73, %v59, 0
    %v78 = vsel %vm73, %v67, 0
    %v81 = vsel %vm73, %v66, 0
    %v84 = vsel %vm73, %v68, 0
    %86 = vmatprep.subr.bf16.mxu0 0
    %87 = vmatpush1.bf16.msra.mxu0 0
    %88 = vmatprep.subr.bf16.mxu0 0
    %89 = vmatpush1.bf16.msra.mxu0 0
    %90 = vmatprep.subr.bf16.mxu0 0
    %91 = vmatpush1.bf16.msra.mxu0 0
    %92 = vmatprep.subr.bf16.mxu0 0
    %93 = vmatpush1.bf16.msra.mxu0 0
    %94 = vmatprep.subr.bf16.mxu0 0
    %95 = vmatpush1.bf16.msra.mxu0 0
    %96 = vmatprep.subr.bf16.mxu0 0
    %97 = vmatpush1.bf16.msra.mxu0 0
    %98 = vmatprep.subr.bf16.mxu0 0
    %99 = vmatpush1.bf16.msra.mxu0 0
    %100 = vmatprep.subr.bf16.mxu0 %v78
    %101 = vmatpush1.bf16.msra.mxu0 %v75
    %102 = vmatprep.subr.bf16.mxu0 0
    %103 = vmatpush2.bf16.msra.mxu0 0
    %104 = vmatprep.subr.bf16.mxu0 0
    %105 = vmatpush2.bf16.msra.mxu0 0
    %106 = vmatprep.subr.bf16.mxu0 0
    %107 = vmatpush2.bf16.msra.mxu0 0
    %108 = vmatprep.subr.bf16.mxu0 0
    %109 = vmatpush2.bf16.msra.mxu0 0
    %110 = vmatprep.subr.bf16.mxu0 0
    %111 = vmatpush2.bf16.msra.mxu0 0
    %112 = vmatprep.subr.bf16.mxu0 0
    %113 = vmatpush2.bf16.msra.mxu0 0
    %114 = vmatprep.subr.bf16.mxu0 0
    %115 = vmatpush2.bf16.msra.mxu0 0
    %116 = vmatprep.subr.bf16.mxu0 0
    %117 = vmatpush2.bf16.msra.mxu0 0
    %118 = vmatprep.mubr.bf16.mxu0 0
    %119 = vmatmul.mubr.bf16.gmra.mxu0 %v71
    %v120 = vpop.f32.mrf.mxu0
    %v121 = vadd.f32 %v39, %v120
    %v122 = vpop.f32.mrf.mxu0
    %v123 = vadd.f32 %v39, %v122
    %v124 = vpop.f32.mrf.mxu0
    %v125 = vadd.f32 %v44, %v124
    %v126 = vpop.f32.mrf.mxu0
    %v127 = vadd.f32 %v44, %v126
    %128 = vdwg.mxu0
    %129 = vmatprep.subr.bf16.mxu0 0
    %130 = vmatpush1.bf16.msra.mxu0 0
    %131 = vmatprep.subr.bf16.mxu0 0
    %132 = vmatpush1.bf16.msra.mxu0 0
    %133 = vmatprep.subr.bf16.mxu0 0
    %134 = vmatpush1.bf16.msra.mxu0 0
    %135 = vmatprep.subr.bf16.mxu0 0
    %136 = vmatpush1.bf16.msra.mxu0 0
    %137 = vmatprep.subr.bf16.mxu0 0
    %138 = vmatpush1.bf16.msra.mxu0 0
    %139 = vmatprep.subr.bf16.mxu0 0
    %140 = vmatpush1.bf16.msra.mxu0 0
    %141 = vmatprep.subr.bf16.mxu0 0
    %142 = vmatpush1.bf16.msra.mxu0 0
    %143 = vmatprep.subr.bf16.mxu0 %v84
    %144 = vmatpush1.bf16.msra.mxu0 %v81
    %145 = vmatprep.subr.bf16.mxu0 0
    %146 = vmatpush2.bf16.msra.mxu0 0
    %147 = vmatprep.subr.bf16.mxu0 0
    %148 = vmatpush2.bf16.msra.mxu0 0
    %149 = vmatprep.subr.bf16.mxu0 0
    %150 = vmatpush2.bf16.msra.mxu0 0
    %151 = vmatprep.subr.bf16.mxu0 0
    %152 = vmatpush2.bf16.msra.mxu0 0
    %153 = vmatprep.subr.bf16.mxu0 0
    %154 = vmatpush2.bf16.msra.mxu0 0
    %155 = vmatprep.subr.bf16.mxu0 0
    %156 = vmatpush2.bf16.msra.mxu0 0
    %157 = vmatprep.subr.bf16.mxu0 0
    %158 = vmatpush2.bf16.msra.mxu0 0
    %159 = vmatprep.subr.bf16.mxu0 0
    %160 = vmatpush2.bf16.msra.mxu0 0
    %161 = vmatprep.mubr.bf16.mxu0 0
    %162 = vmatmul.mubr.bf16.gmra.mxu0 %v71
    %v163 = vpop.f32.mrf.mxu0
    %v164 = vadd.f32 %v39, %v163
    %v165 = vpop.f32.mrf.mxu0
    %v166 = vadd.f32 %v39, %v165
    %v167 = vpop.f32.mrf.mxu0
    %v168 = vadd.f32 %v44, %v167
    %v169 = vpop.f32.mrf.mxu0
    %v170 = vadd.f32 %v44, %v169
    %171 = vdwg.mxu0
    %v172 = vmax.f32 %v121, 0.0
    %v173 = vmax.f32 %v123, 0.0
    %v174 = vmax.f32 %v164, 0.0
    %v175 = vmax.f32 %v166, 0.0
    %v176 = vmax.f32 %v125, 0.0
    %v177 = vmax.f32 %v127, 0.0
    %v178 = vmax.f32 %v168, 0.0
    %v179 = vmax.f32 %v170, 0.0
    %v180 = vmin.f32 %v172, 6.0
    %v181 = vmin.f32 %v173, 6.0
    %v182 = vmin.f32 %v174, 6.0
    %v183 = vmin.f32 %v175, 6.0
    %v184 = vmin.f32 %v176, 6.0
    %v185 = vmin.f32 %v177, 6.0
    %v186 = vmin.f32 %v178, 6.0
    %v187 = vmin.f32 %v179, 6.0
    %v188 = vld [vmem:[%s3] sm:$0xff]
    %v189 = vld [vmem:[%s3 + $0x8] sm:$0xff]
    %190 = vrot.lane.b32.xlu0 %v180, 17
    %v191 = vpop.permute.xlu0 %190
    %192 = vrot.lane.b32.xlu0 %v184, 17
    %v193 = vpop.permute.xlu0 %192
    %194 = vrot.lane.b32.xlu0 %v181, 17
    %v195 = vpop.permute.xlu0 %194
    %196 = vrot.lane.b32.xlu0 %v185, 17
    %v197 = vpop.permute.xlu0 %196
    %198 = vrot.lane.b32.xlu0 %v182, 17
    %v199 = vpop.permute.xlu0 %198
    %200 = vrot.lane.b32.xlu0 %v186, 17
    %v201 = vpop.permute.xlu0 %200
    %202 = vrot.lane.b32.xlu0 %v183, 17
    %v203 = vpop.permute.xlu0 %202
    %204 = vrot.lane.b32.xlu0 %v187, 17
    %v205 = vpop.permute.xlu0 %204
    %v206 = vlaneseq
    %v207 = vand.u32 %v206, 127
    %vm208 = vcmp.lt.s32.totalorder %v207, 17
    %v209 = vsel %vm208, %v199, %v203
    %v210 = vsel %vm208, %v201, %v205
    %v211 = vsel %vm208, %v195, %v199
    %v212 = vsel %vm208, %v197, %v201
    %v213 = vsel %vm208, %v191, %v195
    %v214 = vsel %vm208, %v193, %v197
    %v215 = vsel %vm208, %v203, %v191
    %v216 = vsel %vm208, %v205, %v193
    %v217 = vld [vmem:[%s7] ss:$8 sm:$0xf]
    %v219 = vlaneseq
    %v220 = vshrl.u32 %v219, 7
    %v221 = vsub.s32 0, %v220
    %v222 = vrot.slane %v217, %v221
    %v223 = vlaneseq
    %v224 = vshrl.u32 %v223, 7
    %v225 = vsub.s32 1, %v224
    %v226 = vrot.slane %v217, %v225
    %v227 = vlaneseq
    %v228 = vshrl.u32 %v227, 7
    %v229 = vsub.s32 2, %v228
    %v230 = vrot.slane %v217, %v229
    %v231 = vlaneseq
    %v232 = vshrl.u32 %v231, 7
    %v233 = vsub.s32 3, %v232
    %v234 = vrot.slane %v217, %v233
    %v239 = vmul.f32 %v215, %v222
    %v240 = vmul.f32 %v213, %v226
    %v241 = vmul.f32 %v211, %v230
    %v242 = vmul.f32 %v209, %v234
    %v243 = vmul.f32 %v216, %v222
    %v244 = vmul.f32 %v214, %v226
    %v245 = vmul.f32 %v212, %v230
    %v246 = vmul.f32 %v210, %v234
    %248 = vset.pattern.permute.xlu0 0
    %249 = vperm.xlu0 %248, %v188
    %v250 = vpop.permute.xlu0 %249
    %253 = vset.pattern.permute.xlu0 0
    %254 = vperm.xlu0 %253, %v189
    %v255 = vpop.permute.xlu0 %254
    %v257 = vmul.f32 %v239, %v250
    %v258 = vmul.f32 %v240, %v250
    %v259 = vmul.f32 %v241, %v250
    %v260 = vmul.f32 %v242, %v250
    %v261 = vmul.f32 %v243, %v255
    %v262 = vmul.f32 %v244, %v255
    %v263 = vmul.f32 %v245, %v255
    %v264 = vmul.f32 %v246, %v255
    %265 = vrot.lane.b32.xlu0 %v180, 16
    %v266 = vpop.permute.xlu0 %265
    %267 = vrot.lane.b32.xlu0 %v184, 16
    %v268 = vpop.permute.xlu0 %267
    %269 = vrot.lane.b32.xlu0 %v181, 16
    %v270 = vpop.permute.xlu0 %269
    %271 = vrot.lane.b32.xlu0 %v185, 16
    %v272 = vpop.permute.xlu0 %271
    %273 = vrot.lane.b32.xlu0 %v182, 16
    %v274 = vpop.permute.xlu0 %273
    %275 = vrot.lane.b32.xlu0 %v186, 16
    %v276 = vpop.permute.xlu0 %275
    %277 = vrot.lane.b32.xlu0 %v183, 16
    %v278 = vpop.permute.xlu0 %277
    %279 = vrot.lane.b32.xlu0 %v187, 16
    %v280 = vpop.permute.xlu0 %279
    %vm281 = vcmp.lt.s32.totalorder %v207, 16
    %v282 = vsel %vm281, %v274, %v278
    %v283 = vsel %vm281, %v276, %v280
    %v284 = vsel %vm281, %v270, %v274
    %v285 = vsel %vm281, %v272, %v276
    %v286 = vsel %vm281, %v266, %v270
    %v287 = vsel %vm281, %v268, %v272
    %v288 = vsel %vm281, %v278, %v266
    %v289 = vsel %vm281, %v280, %v268
    %s290 = scalar_lea.vmem %s7, 1
    %v291 = vld [vmem:[%s290] ss:$8 sm:$0xf]
    %v293 = vlaneseq
    %v294 = vshrl.u32 %v293, 7
    %v295 = vsub.s32 0, %v294
    %v296 = vrot.slane %v291, %v295
    %v297 = vlaneseq
    %v298 = vshrl.u32 %v297, 7
    %v299 = vsub.s32 1, %v298
    %v300 = vrot.slane %v291, %v299
    %v301 = vlaneseq
    %v302 = vshrl.u32 %v301, 7
    %v303 = vsub.s32 2, %v302
    %v304 = vrot.slane %v291, %v303
    %v305 = vlaneseq
    %v306 = vshrl.u32 %v305, 7
    %v307 = vsub.s32 3, %v306
    %v308 = vrot.slane %v291, %v307
    %v313 = vmul.f32 %v288, %v296
    %v314 = vmul.f32 %v286, %v300
    %v315 = vmul.f32 %v284, %v304
    %v316 = vmul.f32 %v282, %v308
    %v317 = vmul.f32 %v289, %v296
    %v318 = vmul.f32 %v287, %v300
    %v319 = vmul.f32 %v285, %v304
    %v320 = vmul.f32 %v283, %v308
    %321 = vset.pattern.permute.xlu0 1
    %322 = vperm.xlu0 %321, %v188
    %v323 = vpop.permute.xlu0 %322
    %325 = vset.pattern.permute.xlu0 1
    %326 = vperm.xlu0 %325, %v189
    %v327 = vpop.permute.xlu0 %326
    %v329 = vmul.f32 %v313, %v323
    %v330 = vmul.f32 %v314, %v323
    %v331 = vmul.f32 %v315, %v323
    %v332 = vmul.f32 %v316, %v323
    %v333 = vmul.f32 %v317, %v327
    %v334 = vmul.f32 %v318, %v327
    %v335 = vmul.f32 %v319, %v327
    %v336 = vmul.f32 %v320, %v327
    %337 = vrot.lane.b32.xlu0 %v180, 15
    %v338 = vpop.permute.xlu0 %337
    %339 = vrot.lane.b32.xlu0 %v184, 15
    %v340 = vpop.permute.xlu0 %339
    %341 = vrot.lane.b32.xlu0 %v181, 15
    %v342 = vpop.permute.xlu0 %341
    %343 = vrot.lane.b32.xlu0 %v185, 15
    %v344 = vpop.permute.xlu0 %343
    %345 = vrot.lane.b32.xlu0 %v182, 15
    %v346 = vpop.permute.xlu0 %345
    %347 = vrot.lane.b32.xlu0 %v186, 15
    %v348 = vpop.permute.xlu0 %347
    %349 = vrot.lane.b32.xlu0 %v183, 15
    %v350 = vpop.permute.xlu0 %349
    %351 = vrot.lane.b32.xlu0 %v187, 15
    %v352 = vpop.permute.xlu0 %351
    %vm353 = vcmp.lt.s32.totalorder %v207, 15
    %v354 = vsel %vm353, %v346, %v350
    %v355 = vsel %vm353, %v348, %v352
    %v356 = vsel %vm353, %v342, %v346
    %v357 = vsel %vm353, %v344, %v348
    %v358 = vsel %vm353, %v338, %v342
    %v359 = vsel %vm353, %v340, %v344
    %v360 = vsel %vm353, %v350, %v338
    %v361 = vsel %vm353, %v352, %v340
    %s362 = scalar_lea.vmem %s7, 2
    %v363 = vld [vmem:[%s362] ss:$8 sm:$0xf]
    %v365 = vlaneseq
    %v366 = vshrl.u32 %v365, 7
    %v367 = vsub.s32 0, %v366
    %v368 = vrot.slane %v363, %v367
    %v369 = vlaneseq
    %v370 = vshrl.u32 %v369, 7
    %v371 = vsub.s32 1, %v370
    %v372 = vrot.slane %v363, %v371
    %v373 = vlaneseq
    %v374 = vshrl.u32 %v373, 7
    %v375 = vsub.s32 2, %v374
    %v376 = vrot.slane %v363, %v375
    %v377 = vlaneseq
    %v378 = vshrl.u32 %v377, 7
    %v379 = vsub.s32 3, %v378
    %v380 = vrot.slane %v363, %v379
    %v385 = vmul.f32 %v360, %v368
    %v386 = vmul.f32 %v358, %v372
    %v387 = vmul.f32 %v356, %v376
    %v388 = vmul.f32 %v354, %v380
    %v389 = vmul.f32 %v361, %v368
    %v390 = vmul.f32 %v359, %v372
    %v391 = vmul.f32 %v357, %v376
    %v392 = vmul.f32 %v355, %v380
    %393 = vset.pattern.permute.xlu0 2
    %394 = vperm.xlu0 %393, %v188
    %v395 = vpop.permute.xlu0 %394
    %397 = vset.pattern.permute.xlu0 2
    %398 = vperm.xlu0 %397, %v189
    %v399 = vpop.permute.xlu0 %398
    %v401 = vmul.f32 %v385, %v395
    %v402 = vmul.f32 %v386, %v395
    %v403 = vmul.f32 %v387, %v395
    %v404 = vmul.f32 %v388, %v395
    %v405 = vmul.f32 %v389, %v399
    %v406 = vmul.f32 %v390, %v399
    %v407 = vmul.f32 %v391, %v399
    %v408 = vmul.f32 %v392, %v399
    %v409 = vadd.f32 %v257, %v401
    %v410 = vadd.f32 %v258, %v402
    %v411 = vadd.f32 %v259, %v403
    %v412 = vadd.f32 %v260, %v404
    %v413 = vadd.f32 %v261, %v405
    %v414 = vadd.f32 %v262, %v406
    %v415 = vadd.f32 %v263, %v407
    %v416 = vadd.f32 %v264, %v408
    %417 = vrot.lane.b32.xlu0 %v180, 1
    %v418 = vpop.permute.xlu0 %417
    %419 = vrot.lane.b32.xlu0 %v184, 1
    %v420 = vpop.permute.xlu0 %419
    %421 = vrot.lane.b32.xlu0 %v181, 1
    %v422 = vpop.permute.xlu0 %421
    %423 = vrot.lane.b32.xlu0 %v185, 1
    %v424 = vpop.permute.xlu0 %423
    %425 = vrot.lane.b32.xlu0 %v182, 1
    %v426 = vpop.permute.xlu0 %425
    %427 = vrot.lane.b32.xlu0 %v186, 1
    %v428 = vpop.permute.xlu0 %427
    %429 = vrot.lane.b32.xlu0 %v183, 1
    %v430 = vpop.permute.xlu0 %429
    %431 = vrot.lane.b32.xlu0 %v187, 1
    %v432 = vpop.permute.xlu0 %431
    %vm433 = vcmp.lt.s32.totalorder %v207, 1
    %v434 = vsel %vm433, %v426, %v430
    %v435 = vsel %vm433, %v428, %v432
    %v436 = vsel %vm433, %v422, %v426
    %v437 = vsel %vm433, %v424, %v428
    %v438 = vsel %vm433, %v418, %v422
    %v439 = vsel %vm433, %v420, %v424
    %v440 = vsel %vm433, %v430, %v418
    %v441 = vsel %vm433, %v432, %v420
    %s442 = scalar_lea.vmem %s7, 3
    %v443 = vld [vmem:[%s442] ss:$8 sm:$0xf]
    %v445 = vlaneseq
    %v446 = vshrl.u32 %v445, 7
    %v447 = vsub.s32 0, %v446
    %v448 = vrot.slane %v443, %v447
    %v449 = vlaneseq
    %v450 = vshrl.u32 %v449, 7
    %v451 = vsub.s32 1, %v450
    %v452 = vrot.slane %v443, %v451
    %v453 = vlaneseq
    %v454 = vshrl.u32 %v453, 7
    %v455 = vsub.s32 2, %v454
    %v456 = vrot.slane %v443, %v455
    %v457 = vlaneseq
    %v458 = vshrl.u32 %v457, 7
    %v459 = vsub.s32 3, %v458
    %v460 = vrot.slane %v443, %v459
    %v465 = vmul.f32 %v440, %v448
    %v466 = vmul.f32 %v438, %v452
    %v467 = vmul.f32 %v436, %v456
    %v468 = vmul.f32 %v434, %v460
    %v469 = vmul.f32 %v441, %v448
    %v470 = vmul.f32 %v439, %v452
    %v471 = vmul.f32 %v437, %v456
    %v472 = vmul.f32 %v435, %v460
    %473 = vset.pattern.permute.xlu0 3
    %474 = vperm.xlu0 %473, %v188
    %v475 = vpop.permute.xlu0 %474
    %477 = vset.pattern.permute.xlu0 3
    %478 = vperm.xlu0 %477, %v189
    %v479 = vpop.permute.xlu0 %478
    %v481 = vmul.f32 %v465, %v475
    %v482 = vmul.f32 %v466, %v475
    %v483 = vmul.f32 %v467, %v475
    %v484 = vmul.f32 %v468, %v475
    %v485 = vmul.f32 %v469, %v479
    %v486 = vmul.f32 %v470, %v479
    %v487 = vmul.f32 %v471, %v479
    %v488 = vmul.f32 %v472, %v479
    %v489 = vadd.f32 %v329, %v481
    %v490 = vadd.f32 %v330, %v482
    %v491 = vadd.f32 %v331, %v483
    %v492 = vadd.f32 %v332, %v484
    %v493 = vadd.f32 %v333, %v485
    %v494 = vadd.f32 %v334, %v486
    %v495 = vadd.f32 %v335, %v487
    %v496 = vadd.f32 %v336, %v488
    %497 = vset.pattern.permute.xlu0 4
    %498 = vperm.xlu0 %497, %v188
    %v499 = vpop.permute.xlu0 %498
    %501 = vset.pattern.permute.xlu0 4
    %502 = vperm.xlu0 %501, %v189
    %v503 = vpop.permute.xlu0 %502
    %v505 = vmul.f32 %v180, %v499
    %v506 = vmul.f32 %v181, %v499
    %v507 = vmul.f32 %v182, %v499
    %v508 = vmul.f32 %v183, %v499
    %v509 = vmul.f32 %v184, %v503
    %v510 = vmul.f32 %v185, %v503
    %v511 = vmul.f32 %v186, %v503
    %v512 = vmul.f32 %v187, %v503
    %v513 = vadd.f32 %v409, %v505
    %v514 = vadd.f32 %v410, %v506
    %v515 = vadd.f32 %v411, %v507
    %v516 = vadd.f32 %v412, %v508
    %v517 = vadd.f32 %v413, %v509
    %v518 = vadd.f32 %v414, %v510
    %v519 = vadd.f32 %v415, %v511
    %v520 = vadd.f32 %v416, %v512
    %521 = vrot.lane.b32.xlu0 %v180, 127
    %v522 = vpop.permute.xlu0 %521
    %523 = vrot.lane.b32.xlu0 %v184, 127
    %v524 = vpop.permute.xlu0 %523
    %525 = vrot.lane.b32.xlu0 %v181, 127
    %v526 = vpop.permute.xlu0 %525
    %527 = vrot.lane.b32.xlu0 %v185, 127
    %v528 = vpop.permute.xlu0 %527
    %529 = vrot.lane.b32.xlu0 %v182, 127
    %v530 = vpop.permute.xlu0 %529
    %531 = vrot.lane.b32.xlu0 %v186, 127
    %v532 = vpop.permute.xlu0 %531
    %533 = vrot.lane.b32.xlu0 %v183, 127
    %v534 = vpop.permute.xlu0 %533
    %535 = vrot.lane.b32.xlu0 %v187, 127
    %v536 = vpop.permute.xlu0 %535
    %vm537 = vcmp.lt.s32.totalorder %v207, 127
    %v538 = vsel %vm537, %v530, %v534
    %v539 = vsel %vm537, %v532, %v536
    %v540 = vsel %vm537, %v526, %v530
    %v541 = vsel %vm537, %v528, %v532
    %v542 = vsel %vm537, %v522, %v526
    %v543 = vsel %vm537, %v524, %v528
    %v544 = vsel %vm537, %v534, %v522
    %v545 = vsel %vm537, %v536, %v524
    %s546 = scalar_lea.vmem %s7, 5
    %v547 = vld [vmem:[%s546] ss:$8 sm:$0xf]
    %v549 = vlaneseq
    %v550 = vshrl.u32 %v549, 7
    %v551 = vsub.s32 0, %v550
    %v552 = vrot.slane %v547, %v551
    %v553 = vlaneseq
    %v554 = vshrl.u32 %v553, 7
    %v555 = vsub.s32 1, %v554
    %v556 = vrot.slane %v547, %v555
    %v557 = vlaneseq
    %v558 = vshrl.u32 %v557, 7
    %v559 = vsub.s32 2, %v558
    %v560 = vrot.slane %v547, %v559
    %v561 = vlaneseq
    %v562 = vshrl.u32 %v561, 7
    %v563 = vsub.s32 3, %v562
    %v564 = vrot.slane %v547, %v563
    %v569 = vmul.f32 %v542, %v552
    %v570 = vmul.f32 %v540, %v556
    %v571 = vmul.f32 %v538, %v560
    %v572 = vmul.f32 %v544, %v564
    %v573 = vmul.f32 %v543, %v552
    %v574 = vmul.f32 %v541, %v556
    %v575 = vmul.f32 %v539, %v560
    %v576 = vmul.f32 %v545, %v564
    %577 = vset.pattern.permute.xlu0 5
    %578 = vperm.xlu0 %577, %v188
    %v579 = vpop.permute.xlu0 %578
    %581 = vset.pattern.permute.xlu0 5
    %582 = vperm.xlu0 %581, %v189
    %v583 = vpop.permute.xlu0 %582
    %v585 = vmul.f32 %v569, %v579
    %v586 = vmul.f32 %v570, %v579
    %v587 = vmul.f32 %v571, %v579
    %v588 = vmul.f32 %v572, %v579
    %v589 = vmul.f32 %v573, %v583
    %v590 = vmul.f32 %v574, %v583
    %v591 = vmul.f32 %v575, %v583
    %v592 = vmul.f32 %v576, %v583
    %v593 = vadd.f32 %v489, %v585
    %v594 = vadd.f32 %v490, %v586
    %v595 = vadd.f32 %v491, %v587
    %v596 = vadd.f32 %v492, %v588
    %v597 = vadd.f32 %v493, %v589
    %v598 = vadd.f32 %v494, %v590
    %v599 = vadd.f32 %v495, %v591
    %v600 = vadd.f32 %v496, %v592
    %601 = vrot.lane.b32.xlu0 %v180, 113
    %v602 = vpop.permute.xlu0 %601
    %603 = vrot.lane.b32.xlu0 %v184, 113
    %v604 = vpop.permute.xlu0 %603
    %605 = vrot.lane.b32.xlu0 %v181, 113
    %v606 = vpop.permute.xlu0 %605
    %607 = vrot.lane.b32.xlu0 %v185, 113
    %v608 = vpop.permute.xlu0 %607
    %609 = vrot.lane.b32.xlu0 %v182, 113
    %v610 = vpop.permute.xlu0 %609
    %611 = vrot.lane.b32.xlu0 %v186, 113
    %v612 = vpop.permute.xlu0 %611
    %613 = vrot.lane.b32.xlu0 %v183, 113
    %v614 = vpop.permute.xlu0 %613
    %615 = vrot.lane.b32.xlu0 %v187, 113
    %v616 = vpop.permute.xlu0 %615
    %vm617 = vcmp.lt.s32.totalorder %v207, 113
    %v618 = vsel %vm617, %v610, %v614
    %v619 = vsel %vm617, %v612, %v616
    %v620 = vsel %vm617, %v606, %v610
    %v621 = vsel %vm617, %v608, %v612
    %v622 = vsel %vm617, %v602, %v606
    %v623 = vsel %vm617, %v604, %v608
    %v624 = vsel %vm617, %v614, %v602
    %v625 = vsel %vm617, %v616, %v604
    %s626 = scalar_lea.vmem %s7, 6
    %v627 = vld [vmem:[%s626] ss:$8 sm:$0xf]
    %v629 = vlaneseq
    %v630 = vshrl.u32 %v629, 7
    %v631 = vsub.s32 0, %v630
    %v632 = vrot.slane %v627, %v631
    %v633 = vlaneseq
    %v634 = vshrl.u32 %v633, 7
    %v635 = vsub.s32 1, %v634
    %v636 = vrot.slane %v627, %v635
    %v637 = vlaneseq
    %v638 = vshrl.u32 %v637, 7
    %v639 = vsub.s32 2, %v638
    %v640 = vrot.slane %v627, %v639
    %v641 = vlaneseq
    %v642 = vshrl.u32 %v641, 7
    %v643 = vsub.s32 3, %v642
    %v644 = vrot.slane %v627, %v643
    %v649 = vmul.f32 %v622, %v632
    %v650 = vmul.f32 %v620, %v636
    %v651 = vmul.f32 %v618, %v640
    %v652 = vmul.f32 %v624, %v644
    %v653 = vmul.f32 %v623, %v632
    %v654 = vmul.f32 %v621, %v636
    %v655 = vmul.f32 %v619, %v640
    %v656 = vmul.f32 %v625, %v644
    %657 = vset.pattern.permute.xlu0 6
    %658 = vperm.xlu0 %657, %v188
    %v659 = vpop.permute.xlu0 %658
    %661 = vset.pattern.permute.xlu0 6
    %662 = vperm.xlu0 %661, %v189
    %v663 = vpop.permute.xlu0 %662
    %v665 = vmul.f32 %v649, %v659
    %v666 = vmul.f32 %v650, %v659
    %v667 = vmul.f32 %v651, %v659
    %v668 = vmul.f32 %v652, %v659
    %v669 = vmul.f32 %v653, %v663
    %v670 = vmul.f32 %v654, %v663
    %v671 = vmul.f32 %v655, %v663
    %v672 = vmul.f32 %v656, %v663
    %v673 = vadd.f32 %v513, %v665
    %v674 = vadd.f32 %v514, %v666
    %v675 = vadd.f32 %v515, %v667
    %v676 = vadd.f32 %v516, %v668
    %v677 = vadd.f32 %v517, %v669
    %v678 = vadd.f32 %v518, %v670
    %v679 = vadd.f32 %v519, %v671
    %v680 = vadd.f32 %v520, %v672
    %681 = vrot.lane.b32.xlu0 %v180, 112
    %v682 = vpop.permute.xlu0 %681
    %683 = vrot.lane.b32.xlu0 %v184, 112
    %v684 = vpop.permute.xlu0 %683
    %685 = vrot.lane.b32.xlu0 %v181, 112
    %v686 = vpop.permute.xlu0 %685
    %687 = vrot.lane.b32.xlu0 %v185, 112
    %v688 = vpop.permute.xlu0 %687
    %689 = vrot.lane.b32.xlu0 %v182, 112
    %v690 = vpop.permute.xlu0 %689
    %691 = vrot.lane.b32.xlu0 %v186, 112
    %v692 = vpop.permute.xlu0 %691
    %693 = vrot.lane.b32.xlu0 %v183, 112
    %v694 = vpop.permute.xlu0 %693
    %695 = vrot.lane.b32.xlu0 %v187, 112
    %v696 = vpop.permute.xlu0 %695
    %vm697 = vcmp.lt.s32.totalorder %v207, 112
    %v698 = vsel %vm697, %v690, %v694
    %v699 = vsel %vm697, %v692, %v696
    %v700 = vsel %vm697, %v686, %v690
    %v701 = vsel %vm697, %v688, %v692
    %v702 = vsel %vm697, %v682, %v686
    %v703 = vsel %vm697, %v684, %v688
    %v704 = vsel %vm697, %v694, %v682
    %v705 = vsel %vm697, %v696, %v684
    %s706 = scalar_lea.vmem %s7, 7
    %v707 = vld [vmem:[%s706] ss:$8 sm:$0xf]
    %v709 = vlaneseq
    %v710 = vshrl.u32 %v709, 7
    %v711 = vsub.s32 0, %v710
    %v712 = vrot.slane %v707, %v711
    %v713 = vlaneseq
    %v714 = vshrl.u32 %v713, 7
    %v715 = vsub.s32 1, %v714
    %v716 = vrot.slane %v707, %v715
    %v717 = vlaneseq
    %v718 = vshrl.u32 %v717, 7
    %v719 = vsub.s32 2, %v718
    %v720 = vrot.slane %v707, %v719
    %v721 = vlaneseq
    %v722 = vshrl.u32 %v721, 7
    %v723 = vsub.s32 3, %v722
    %v724 = vrot.slane %v707, %v723
    %v729 = vmul.f32 %v702, %v712
    %v730 = vmul.f32 %v700, %v716
    %v731 = vmul.f32 %v698, %v720
    %v732 = vmul.f32 %v704, %v724
    %v733 = vmul.f32 %v703, %v712
    %v734 = vmul.f32 %v701, %v716
    %v735 = vmul.f32 %v699, %v720
    %v736 = vmul.f32 %v705, %v724
    %737 = vset.pattern.permute.xlu0 7
    %738 = vperm.xlu0 %737, %v188
    %v739 = vpop.permute.xlu0 %738
    %741 = vset.pattern.permute.xlu0 7
    %742 = vperm.xlu0 %741, %v189
    %v743 = vpop.permute.xlu0 %742
    %v745 = vmul.f32 %v729, %v739
    %v746 = vmul.f32 %v730, %v739
    %v747 = vmul.f32 %v731, %v739
    %v748 = vmul.f32 %v732, %v739
    %v749 = vmul.f32 %v733, %v743
    %v750 = vmul.f32 %v734, %v743
    %v751 = vmul.f32 %v735, %v743
    %v752 = vmul.f32 %v736, %v743
    %v753 = vadd.f32 %v593, %v745
    %v754 = vadd.f32 %v594, %v746
    %v755 = vadd.f32 %v595, %v747
    %v756 = vadd.f32 %v596, %v748
    %v757 = vadd.f32 %v597, %v749
    %v758 = vadd.f32 %v598, %v750
    %v759 = vadd.f32 %v599, %v751
    %v760 = vadd.f32 %v600, %v752
    %761 = vrot.lane.b32.xlu0 %v180, 111
    %v762 = vpop.permute.xlu0 %761
    %763 = vrot.lane.b32.xlu0 %v184, 111
    %v764 = vpop.permute.xlu0 %763
    %765 = vrot.lane.b32.xlu0 %v181, 111
    %v766 = vpop.permute.xlu0 %765
    %767 = vrot.lane.b32.xlu0 %v185, 111
    %v768 = vpop.permute.xlu0 %767
    %769 = vrot.lane.b32.xlu0 %v182, 111
    %v770 = vpop.permute.xlu0 %769
    %771 = vrot.lane.b32.xlu0 %v186, 111
    %v772 = vpop.permute.xlu0 %771
    %773 = vrot.lane.b32.xlu0 %v183, 111
    %v774 = vpop.permute.xlu0 %773
    %775 = vrot.lane.b32.xlu0 %v187, 111
    %v776 = vpop.permute.xlu0 %775
    %vm777 = vcmp.lt.s32.totalorder %v207, 111
    %v778 = vsel %vm777, %v770, %v774
    %v779 = vsel %vm777, %v772, %v776
    %v780 = vsel %vm777, %v766, %v770
    %v781 = vsel %vm777, %v768, %v772
    %v782 = vsel %vm777, %v762, %v766
    %v783 = vsel %vm777, %v764, %v768
    %v784 = vsel %vm777, %v774, %v762
    %v785 = vsel %vm777, %v776, %v764
    %s786 = scalar_lea.vmem %s7, 32
    %v787 = vld [vmem:[%s786] ss:$8 sm:$0xf]
    %v789 = vlaneseq
    %v790 = vshrl.u32 %v789, 7
    %v791 = vsub.s32 0, %v790
    %v792 = vrot.slane %v787, %v791
    %v793 = vlaneseq
    %v794 = vshrl.u32 %v793, 7
    %v795 = vsub.s32 1, %v794
    %v796 = vrot.slane %v787, %v795
    %v797 = vlaneseq
    %v798 = vshrl.u32 %v797, 7
    %v799 = vsub.s32 2, %v798
    %v800 = vrot.slane %v787, %v799
    %v801 = vlaneseq
    %v802 = vshrl.u32 %v801, 7
    %v803 = vsub.s32 3, %v802
    %v804 = vrot.slane %v787, %v803
    %v809 = vmul.f32 %v782, %v792
    %v810 = vmul.f32 %v780, %v796
    %v811 = vmul.f32 %v778, %v800
    %v812 = vmul.f32 %v784, %v804
    %v813 = vmul.f32 %v783, %v792
    %v814 = vmul.f32 %v781, %v796
    %v815 = vmul.f32 %v779, %v800
    %v816 = vmul.f32 %v785, %v804
    %817 = vset.pattern.permute.xlu0 8
    %818 = vperm.xlu0 %817, %v188
    %v819 = vpop.permute.xlu0 %818
    %821 = vset.pattern.permute.xlu0 8
    %822 = vperm.xlu0 %821, %v189
    %v823 = vpop.permute.xlu0 %822
    %v825 = vmul.f32 %v809, %v819
    %v826 = vmul.f32 %v810, %v819
    %v827 = vmul.f32 %v811, %v819
    %v828 = vmul.f32 %v812, %v819
    %v829 = vmul.f32 %v813, %v823
    %v830 = vmul.f32 %v814, %v823
    %v831 = vmul.f32 %v815, %v823
    %v832 = vmul.f32 %v816, %v823
    %v833 = vadd.f32 %v673, %v825
    %v834 = vadd.f32 %v674, %v826
    %v835 = vadd.f32 %v675, %v827
    %v836 = vadd.f32 %v676, %v828
    %v837 = vadd.f32 %v677, %v829
    %v838 = vadd.f32 %v678, %v830
    %v839 = vadd.f32 %v679, %v831
    %v840 = vadd.f32 %v680, %v832
    %v841 = vadd.f32 %v833, %v753
    %v842 = vadd.f32 %v834, %v754
    %v843 = vadd.f32 %v835, %v755
    %v844 = vadd.f32 %v836, %v756
    %v845 = vadd.f32 %v837, %v757
    %v846 = vadd.f32 %v838, %v758
    %v847 = vadd.f32 %v839, %v759
    %v848 = vadd.f32 %v840, %v760
    %v849 = vld [vmem:[%s4] sm:$0xff]
    %v850 = vld [vmem:[%s4 + $0x8] sm:$0xff]
    %852 = vset.pattern.permute.xlu0 0
    %853 = vperm.xlu0 %852, %v849
    %v854 = vpop.permute.xlu0 %853
    %857 = vset.pattern.permute.xlu0 0
    %858 = vperm.xlu0 %857, %v850
    %v859 = vpop.permute.xlu0 %858
    %v861 = vadd.f32 %v841, %v854
    %v862 = vadd.f32 %v842, %v854
    %v863 = vadd.f32 %v843, %v854
    %v864 = vadd.f32 %v844, %v854
    %v865 = vadd.f32 %v845, %v859
    %v866 = vadd.f32 %v846, %v859
    %v867 = vadd.f32 %v847, %v859
    %v868 = vadd.f32 %v848, %v859
    %v869 = vmax.f32 %v861, 0.0
    %v870 = vmax.f32 %v862, 0.0
    %v871 = vmax.f32 %v863, 0.0
    %v872 = vmax.f32 %v864, 0.0
    %v873 = vmax.f32 %v865, 0.0
    %v874 = vmax.f32 %v866, 0.0
    %v875 = vmax.f32 %v867, 0.0
    %v876 = vmax.f32 %v868, 0.0
    %v877 = vmin.f32 %v869, 6.0
    %v878 = vmin.f32 %v870, 6.0
    %v879 = vmin.f32 %v871, 6.0
    %v880 = vmin.f32 %v872, 6.0
    %v881 = vmin.f32 %v873, 6.0
    %v882 = vmin.f32 %v874, 6.0
    %v883 = vmin.f32 %v875, 6.0
    %v884 = vmin.f32 %v876, 6.0
    %v885 = vld [vmem:[%s5] sm:$0xf]
    %v886 = vpack.c.bf16 %v881, %v877
    %v887 = vpack.c.bf16 %v882, %v878
    %v888 = vpack.c.bf16 %v883, %v879
    %v889 = vpack.c.bf16 %v884, %v880
    %v890 = vld [vmem:[%s6] sm:$0xff]
    %892 = vset.pattern.permute.xlu0 0
    %893 = vperm.xlu0 %892, %v890
    %v894 = vpop.permute.xlu0 %893
    %vm896 = vcmask 130048
    %v898 = vsel %vm896, %v885, 0
    %900 = vmatprep.subr.bf16.mxu0 0
    %901 = vmatpush1.bf16.msra.mxu0 0
    %902 = vmatprep.subr.bf16.mxu0 0
    %903 = vmatpush1.bf16.msra.mxu0 0
    %904 = vmatprep.subr.bf16.mxu0 0
    %905 = vmatpush1.bf16.msra.mxu0 0
    %906 = vmatprep.subr.bf16.mxu0 0
    %907 = vmatpush1.bf16.msra.mxu0 0
    %908 = vmatprep.subr.bf16.mxu0 0
    %909 = vmatpush1.bf16.msra.mxu0 0
    %910 = vmatprep.subr.bf16.mxu0 0
    %911 = vmatpush1.bf16.msra.mxu0 0
    %912 = vmatprep.subr.bf16.mxu0 0
    %913 = vmatpush1.bf16.msra.mxu0 0
    %914 = vmatprep.subr.bf16.mxu0 %v887
    %915 = vmatpush1.bf16.msra.mxu0 %v886
    %916 = vmatprep.subr.bf16.mxu0 0
    %917 = vmatpush2.bf16.msra.mxu0 0
    %918 = vmatprep.subr.bf16.mxu0 0
    %919 = vmatpush2.bf16.msra.mxu0 0
    %920 = vmatprep.subr.bf16.mxu0 0
    %921 = vmatpush2.bf16.msra.mxu0 0
    %922 = vmatprep.subr.bf16.mxu0 0
    %923 = vmatpush2.bf16.msra.mxu0 0
    %924 = vmatprep.subr.bf16.mxu0 0
    %925 = vmatpush2.bf16.msra.mxu0 0
    %926 = vmatprep.subr.bf16.mxu0 0
    %927 = vmatpush2.bf16.msra.mxu0 0
    %928 = vmatprep.subr.bf16.mxu0 0
    %929 = vmatpush2.bf16.msra.mxu0 0
    %930 = vmatprep.subr.bf16.mxu0 0
    %931 = vmatpush2.bf16.msra.mxu0 0
    %932 = vmatprep.mubr.bf16.mxu0 0
    %933 = vmatmul.mubr.bf16.gmra.mxu0 %v898
    %v934 = vpop.f32.mrf.mxu0
    %v935 = vadd.f32 %v894, %v934
    %v936 = vpop.f32.mrf.mxu0
    %v937 = vadd.f32 %v894, %v936
    %v938 = vpop.f32.mrf.mxu0
    %v939 = vpop.f32.mrf.mxu0
    %940 = vdwg.mxu0
    %941 = vmatprep.subr.bf16.mxu0 0
    %942 = vmatpush1.bf16.msra.mxu0 0
    %943 = vmatprep.subr.bf16.mxu0 0
    %944 = vmatpush1.bf16.msra.mxu0 0
    %945 = vmatprep.subr.bf16.mxu0 0
    %946 = vmatpush1.bf16.msra.mxu0 0
    %947 = vmatprep.subr.bf16.mxu0 0
    %948 = vmatpush1.bf16.msra.mxu0 0
    %949 = vmatprep.subr.bf16.mxu0 0
    %950 = vmatpush1.bf16.msra.mxu0 0
    %951 = vmatprep.subr.bf16.mxu0 0
    %952 = vmatpush1.bf16.msra.mxu0 0
    %953 = vmatprep.subr.bf16.mxu0 0
    %954 = vmatpush1.bf16.msra.mxu0 0
    %955 = vmatprep.subr.bf16.mxu0 %v889
    %956 = vmatpush1.bf16.msra.mxu0 %v888
    %957 = vmatprep.subr.bf16.mxu0 0
    %958 = vmatpush2.bf16.msra.mxu0 0
    %959 = vmatprep.subr.bf16.mxu0 0
    %960 = vmatpush2.bf16.msra.mxu0 0
    %961 = vmatprep.subr.bf16.mxu0 0
    %962 = vmatpush2.bf16.msra.mxu0 0
    %963 = vmatprep.subr.bf16.mxu0 0
    %964 = vmatpush2.bf16.msra.mxu0 0
    %965 = vmatprep.subr.bf16.mxu0 0
    %966 = vmatpush2.bf16.msra.mxu0 0
    %967 = vmatprep.subr.bf16.mxu0 0
    %968 = vmatpush2.bf16.msra.mxu0 0
    %969 = vmatprep.subr.bf16.mxu0 0
    %970 = vmatpush2.bf16.msra.mxu0 0
    %971 = vmatprep.subr.bf16.mxu0 0
    %972 = vmatpush2.bf16.msra.mxu0 0
    %973 = vmatprep.mubr.bf16.mxu0 0
    %974 = vmatmul.mubr.bf16.gmra.mxu0 %v898
    %v975 = vpop.f32.mrf.mxu0
    %v976 = vadd.f32 %v894, %v975
    %v977 = vpop.f32.mrf.mxu0
    %v978 = vadd.f32 %v894, %v977
    %v979 = vpop.f32.mrf.mxu0
    %v980 = vpop.f32.mrf.mxu0
    %981 = vdwg.mxu0
    %v982 = vmax.f32 %v935, 0.0
    %v983 = vmax.f32 %v937, 0.0
    %v984 = vmax.f32 %v976, 0.0
    %v985 = vmax.f32 %v978, 0.0
    %v986 = vmin.f32 %v982, 6.0
    %v987 = vmin.f32 %v983, 6.0
    %v988 = vmin.f32 %v984, 6.0
    %v989 = vmin.f32 %v985, 6.0
    %990 = vst [vmem:[#allocation2] sm:$0xff] %v986
    %991 = vst [vmem:[#allocation2 + $0x8] sm:$0xff] %v987
    %992 = vst [vmem:[#allocation2 + $0x10] sm:$0xff] %v988
    %993 = vst [vmem:[#allocation2 + $0x18] sm:$0xff] %v989
    // Predicated region
    $region34: #{linear_block_cm.1} parent=1 // pred_check
      _
    $region35: #{linear_block_cm.1} parent=1 // pred_check_branch
      %995 = sbr.rel (0) target = $region37
    $region36: #{linear_block_cm.1} parent=1 // pred_region
      %s997 = ssub.s32 512, 512
      %998 = vsyncadd [#allocation3], %s997
      %s1000 = sshll.u32 [#allocation2], 4
      %s1001 = int_to_ptr.vmem [resolvable:$true] %s1000
      %1003 = dma.vmem_to_hbm [thread:$0]  %s1001, 512, %s8, [#allocation3]
    $region37: #{linear_block_cm.1} parent=1 // pred_fallthru
      _
    // Predicated region
    $region38: #{linear_block_cm.1} parent=1 // pred_check
      _
    $region39: #{linear_block_cm.1} parent=1 // pred_check_branch
      %1005 = sbr.rel (0) target = $region41
    $region40: #{linear_block_cm.1} parent=1 // pred_region
      %1006 = dma.done [#allocation3], 512
    $region41: #{linear_block_cm.1} parent=1 // pred_fallthru
      _
    %1007 = vsyncpa [#allocation3], 1

</llo_original>
